<compile_context>
chip_gen: v7x
topology: tpu7x:2x2x1
jax: 0.10.0
libtpu: 0.0.40
codegen_flags: <defaults>
</compile_context>

<pallas_src>
import math
from functools import partial

import numpy as np
import jax
import jax.numpy as jnp
from jax.experimental import pallas as pl
from jax.experimental.pallas import tpu as pltpu


_LANES = 128
# ~2 MiB per buffer; with double-buffered in + out that is <= ~8 MiB of VMEM,
# comfortably inside the scoped limit on v5e (16 MiB default) and far under
# v6e/v7x budgets.
_TARGET_TILE_BYTES = 2 * 1024 * 1024
_VMEM_LIMIT_BYTES = 32 * 1024 * 1024


# ----------------------------------------------------------------------------- #
# Pallas kernel: identity copy (the exact semantics of LatticeCrf.forward)
# ----------------------------------------------------------------------------- #
def _copy_kernel(x_ref, o_ref):
    # Full-tile, lane-dense VMEM copy (unmasked vst when cols == 128).
    o_ref[...] = x_ref[...]


def _tile_rows(total_rows: int, row_bytes: int) -> int:
    """Largest row tile that fits the per-buffer budget.

    Multiples of 32 rows satisfy the sublane divisibility rule for f32/bf16/i8;
    a single full-extent block is always legal via the full-dim exception.
    """
    max_rows = max(32, (_TARGET_TILE_BYTES // max(row_bytes, 1)) // 32 * 32)
    if total_rows <= max_rows:
        return total_rows  # one block covering the full extent
    return max_rows


def _copy_2d(x2d: jax.Array) -> jax.Array:
    rows, cols = x2d.shape
    tr = _tile_rows(rows, cols * x2d.dtype.itemsize)
    grid = (pl.cdiv(rows, tr),)
    return pl.pallas_call(
        _copy_kernel,
        out_shape=jax.ShapeDtypeStruct((rows, cols), x2d.dtype),
        grid=grid,
        in_specs=[pl.BlockSpec((tr, cols), lambda i: (i, 0))],
        out_specs=pl.BlockSpec((tr, cols), lambda i: (i, 0)),
        # Output reuses the (donated) input HBM buffer: no extra allocation.
        input_output_aliases={0: 0},
        compiler_params=pltpu.CompilerParams(
            dimension_semantics=("parallel",),
            vmem_limit_bytes=_VMEM_LIMIT_BYTES,
        ),
    )(x2d)


@partial(jax.jit, donate_argnums=(0,))
def lattice_crf_forward(inputs: jax.Array) -> jax.Array:
    """Pallas implementation of LatticeCrf.forward: outputs = inputs.

    NOTE: the cheapest correct implementation is simply `return inputs` (no
    pallas_call at all).  The kernel boundary is kept here with input/output
    aliasing + donation so the pass-through costs no extra HBM allocation and
    the residual copy runs as a lane-dense, large-tile pipeline.
    """
    shape = inputs.shape
    total = math.prod(shape)
    if total % _LANES == 0:
        # Lane-dense slab: last dim is exactly 128 lanes -> unmasked full-vreg
        # loads/stores and a short grid over large row tiles.
        x2d = jnp.reshape(inputs, (total // _LANES, _LANES))
    else:
        # Fallback: keep the trailing dim on the lane axis (full-dim exception).
        x2d = jnp.reshape(inputs, (total // shape[-1], shape[-1]))
    out2d = _copy_2d(x2d)
    return jnp.reshape(out2d, shape)


# ----------------------------------------------------------------------------- #
# Deterministic parameter setup mirroring LatticeCrf.__init__ (shapes only).
# These parameters are NOT consumed by forward(); they are built here to honor
# the module's constructor contract.
# ----------------------------------------------------------------------------- #
def make_lattice_crf_params(vocab_size: int, duration_len: int = 1):
    V, D = vocab_size, duration_len
    transition_weights = np.zeros((V, V), dtype=np.float32)
    initial_weights = np.zeros((V,), dtype=np.float32)
    final_weights = np.zeros((V,), dtype=np.float32)
    duration_weights = np.zeros((V, V, D), dtype=np.float32)

    # transition FST: per state i -> (init arc, final arc), then V*V transition arcs.
    transition_params = np.concatenate(
        [
            np.stack([initial_weights, final_weights], axis=1).reshape(-1),
            transition_weights.reshape(-1),
        ]
    ).astype(np.float32)

    # duration FST: 1 epsilon back-arc + per (i,j): init arc, D duration arcs, final arc.
    dur_arcs = [np.zeros((1,), dtype=np.float32)]
    init_w = np.zeros((V, V), dtype=np.float32)
    final_w = np.zeros((V, V), dtype=np.float32)
    for i in range(V):
        for j in range(V):
            dur_arcs.append(init_w[i, j : j + 1])
            dur_arcs.append(duration_weights[i, j])
            dur_arcs.append(final_w[i, j : j + 1])
    duration_params = np.concatenate(dur_arcs).astype(np.float32)

    # TODO(synk): GTN FST composition / forward_score / viterbi_path (log_prob,
    # argmax) are dynamic graph algorithms with no dense Pallas equivalent; only
    # forward() (identity) is implemented as a kernel.
    return {
        "transition": jnp.asarray(transition_params),
        "duration": jnp.asarray(duration_params),
    }


if __name__ == "__main__":
    vocab_size = 4
    num_arc_classes = vocab_size * vocab_size + 2 * vocab_size  # 24 (what scores_to_arc yields)
    batch, seq_len = 2, 8

    params = make_lattice_crf_params(vocab_size, duration_len=1)

    key = jax.random.PRNGKey(0)
    inputs = jax.random.normal(
        key, (batch, seq_len, num_arc_classes), dtype=jnp.float32
    )

    # Snapshot before calling: the wrapper donates the input buffer, so the
    # original device array is invalidated after the call.
    inputs_host = np.asarray(inputs)
    expected_shape, expected_dtype = inputs.shape, inputs.dtype

    outputs = lattice_crf_forward(inputs)
    outputs = jax.block_until_ready(outputs)

    # forward() is identity: verify exact pass-through semantics.
    np.testing.assert_array_equal(np.asarray(outputs), inputs_host)
    assert outputs.shape == expected_shape and outputs.dtype == expected_dtype

    print("KERNEL_OK")
</pallas_src>

<mosaic_0001>
module attributes {stable_mosaic.version = 11 : i64} {
  func.func @_copy_kernel(%arg0: i32, %arg1: memref<3x128xf32, #tpu.memory_space<vmem>>, %arg2: memref<3x128xf32, #tpu.memory_space<vmem>>) attributes {dimension_semantics = [#tpu.dimension_semantics<parallel>], iteration_bounds = array<i64: 1>, scalar_prefetch = 0 : i64, scratch_operands = 0 : i64, tpu.core_type = #tpu.core_type<tc>, window_params = [{transform_indices = @transform_0, window_bounds = array<i64: 3, 128>}, {transform_indices = @transform_1, window_bounds = array<i64: 3, 128>}]} {
    %c0 = arith.constant 0 : index
    %c0_0 = arith.constant 0 : index
    %0 = vector.load %arg1[%c0, %c0_0] : memref<3x128xf32, #tpu.memory_space<vmem>>, vector<3x128xf32>
    %c0_1 = arith.constant 0 : index
    %c0_2 = arith.constant 0 : index
    %1 = vector.load %arg2[%c0_1, %c0_2] : memref<3x128xf32, #tpu.memory_space<vmem>>, vector<3x128xf32>
    tpu.vector_store %arg2[%c0_1, %c0_2], %0 {strides = array<i32>} : memref<3x128xf32, #tpu.memory_space<vmem>>, vector<3x128xf32>,
    return
  }
  func.func @transform_0(%arg0: i32) -> (i32, i32) {
    %c0_i32 = arith.constant 0 : i32
    %c0_i32_0 = arith.constant 0 : i32
    return %arg0, %c0_i32 : i32, i32
  }
  func.func @transform_1(%arg0: i32) -> (i32, i32) {
    %c0_i32 = arith.constant 0 : i32
    %c0_i32_0 = arith.constant 0 : i32
    return %arg0, %c0_i32 : i32, i32
  }
}

</mosaic_0001>

<llo_original>
// kernel: lattice_crf_forward.1
$region0: #{lattice_crf_forward.1}
  #allocation0 [shape = 'u32[]', space=smem, size = 0x4, offset = 0x4, fixed_abs, tag = 'smem constant byte address 0x4 - core index']
  #allocation1 [shape = 'u32[144,128]{1,0:T(1,128)}', space=vmem, size = 0x12000, scoped, tag = 'internal scratch']
  %s0 = inlined_call_operand.vmem [shape: f32[3,128], index: 0, kind: input, shape index: {}, may-alias: {0,1}]
  %s1 = inlined_call_operand.vmem [shape: f32[3,128], index: 1, kind: output, shape index: {}, may-alias: {0,1}]
  %s2 = sld [smem:[#allocation0]]
  $region14: #{lattice_crf_forward.1} parent=0
    _
  %s4 = ssub.s32 1, %s2
  %s5 = scalar_select 0, %s4, %s2
  // Predicated region
  $region2: #{lattice_crf_forward.1} parent=0 // pred_check
    _
  $region3: #{lattice_crf_forward.1} parent=0 // pred_check_branch
    %7 = sbr.rel (0) target = $region5
  $region4: #{lattice_crf_forward.1} parent=0 // pred_region
    _
  $region5: #{lattice_crf_forward.1} parent=0 // pred_fallthru
    _
  %v8 = vld [vmem:[%s0] sm:$0x7]
  %9 = vst [vmem:[%s1] sm:$0x7] %v8
  // Predicated region
  $region6: #{lattice_crf_forward.1} parent=0 // pred_check
    _
  $region7: #{lattice_crf_forward.1} parent=0 // pred_check_branch
    %11 = sbr.rel (0) target = $region9
  $region8: #{lattice_crf_forward.1} parent=0 // pred_region
    _
  $region9: #{lattice_crf_forward.1} parent=0 // pred_fallthru
    _
  // Predicated region
  $region10: #{lattice_crf_forward.1} parent=0 // pred_check
    _
  $region11: #{lattice_crf_forward.1} parent=0 // pred_check_branch
    %13 = sbr.rel (0) target = $region13
  $region12: #{lattice_crf_forward.1} parent=0 // pred_region
    _
  $region13: #{lattice_crf_forward.1} parent=0 // pred_fallthru
    _

</llo_original>
